<compile_context>
chip_gen: v5e
topology: v5e:2x2
jax: 0.10.0
libtpu: 0.0.40
codegen_flags: <defaults>
</compile_context>

<pallas_src>
import functools

import jax
import jax.numpy as jnp
from jax.experimental import pallas as pl
from jax.experimental.pallas import tpu as pltpu

LN_EPS = 1e-5  # nn.LayerNorm default


def _round_up(x, m):
    return (x + m - 1) // m * m


def _layer_norm_f32(xf, gamma_ref, beta_ref):
    """xf: f32 (..., D); gamma/beta refs: (1, D). Biased variance like torch."""
    mean = jnp.mean(xf, axis=-1, keepdims=True)
    xc = xf - mean
    var = jnp.mean(xc * xc, axis=-1, keepdims=True)
    inv = jax.lax.rsqrt(var + LN_EPS)
    return xc * inv * gamma_ref[...].astype(jnp.float32) \
        + beta_ref[...].astype(jnp.float32)


# ---------------------------------------------------------------------------
# PreNorm + Attention + residual
# ---------------------------------------------------------------------------
def attn_kernel(x_ref, gamma_ref, beta_ref, wqkv_ref, wo_ref, bo_ref, o_ref,
                *, heads, head_dim, scale):
    T, N, D = x_ref.shape
    inner = heads * head_dim

    xf = x_ref[...].astype(jnp.float32)                 # (T, N, D)
    y = _layer_norm_f32(xf, gamma_ref, beta_ref)        # (T, N, D) f32

    # qkv projection (no bias), flat 2-D matmul on the MXU
    y2 = y.astype(wqkv_ref.dtype).reshape(T * N, D)
    qkv = jnp.dot(y2, wqkv_ref[...],
                  preferred_element_type=jnp.float32)   # (T*N, 3*inner) f32
    qkv = qkv.reshape(T, N, 3 * inner)

    head_outs = []
    for h in range(heads):
        q = qkv[..., h * head_dim:(h + 1) * head_dim]
        k = qkv[..., inner + h * head_dim: inner + (h + 1) * head_dim]
        v = qkv[..., 2 * inner + h * head_dim: 2 * inner + (h + 1) * head_dim]
        dots = jnp.einsum('tnd,tmd->tnm', q, k,
                          preferred_element_type=jnp.float32) * scale
        dots = dots - jnp.max(dots, axis=-1, keepdims=True)
        p = jnp.exp(dots)
        attn = p / jnp.sum(p, axis=-1, keepdims=True)   # softmax over keys
        head_outs.append(jnp.einsum('tnm,tmd->tnd', attn, v,
                                    preferred_element_type=jnp.float32))

    cat = jnp.concatenate(head_outs, axis=-1).reshape(T * N, inner)
    proj = jnp.dot(cat.astype(wo_ref.dtype), wo_ref[...],
                   preferred_element_type=jnp.float32).reshape(T, N, D)
    proj = proj + bo_ref[...].astype(jnp.float32)       # (1, D) broadcasts

    o_ref[...] = (xf + proj).astype(o_ref.dtype)        # fused residual


def prenorm_attention_block(x, params, *, heads, head_dim, tile_p=8):
    """x: (B, P, N, D) -> (B, P, N, D) = x + Attention(LN(x))."""
    B, P, N, D = x.shape
    inner = heads * head_dim
    scale = head_dim ** (-0.5)

    BP = B * P
    x3 = x.reshape(BP, N, D)
    tile_p = min(tile_p, BP)
    BP_pad = _round_up(BP, tile_p)
    if BP_pad != BP:
        x3 = jnp.pad(x3, ((0, BP_pad - BP), (0, 0), (0, 0)))

    kernel = functools.partial(attn_kernel, heads=heads, head_dim=head_dim,
                               scale=scale)
    res_spec = lambda: pl.BlockSpec  # noqa: E731 (readability only)

    out = pl.pallas_call(
        kernel,
        out_shape=jax.ShapeDtypeStruct((BP_pad, N, D), x.dtype),
        grid_spec=pltpu.PrefetchScalarGridSpec(
            num_scalar_prefetch=0,
            grid=(BP_pad // tile_p,),
            in_specs=[
                pl.BlockSpec((tile_p, N, D), lambda i: (i, 0, 0)),   # x (streamed)
                pl.BlockSpec((1, D), lambda i: (0, 0)),              # gamma (resident)
                pl.BlockSpec((1, D), lambda i: (0, 0)),              # beta
                pl.BlockSpec((D, 3 * inner), lambda i: (0, 0)),      # Wqkv
                pl.BlockSpec((inner, D), lambda i: (0, 0)),          # Wo
                pl.BlockSpec((1, D), lambda i: (0, 0)),              # bo
            ],
            out_specs=pl.BlockSpec((tile_p, N, D), lambda i: (i, 0, 0)),
        ),
        compiler_params=pltpu.CompilerParams(
            dimension_semantics=("parallel",)),
    )(x3, params["ln_gamma"], params["ln_beta"],
      params["wqkv"], params["wo"], params["bo"])

    return out[:BP].reshape(B, P, N, D)


# ---------------------------------------------------------------------------
# PreNorm + FeedForward (Linear -> SiLU -> Linear) + residual
# ---------------------------------------------------------------------------
def ffn_kernel(x_ref, gamma_ref, beta_ref, w1_ref, b1_ref, w2_ref, b2_ref,
               o_ref):
    xf = x_ref[...].astype(jnp.float32)                 # (R, D)
    y = _layer_norm_f32(xf, gamma_ref, beta_ref)

    h = jnp.dot(y.astype(w1_ref.dtype), w1_ref[...],
                preferred_element_type=jnp.float32)
    h = h + b1_ref[...].astype(jnp.float32)             # (1, H) broadcasts
    h = h * jax.nn.sigmoid(h)                           # SiLU (EUP sigmoid)

    out = jnp.dot(h.astype(w2_ref.dtype), w2_ref[...],
                  preferred_element_type=jnp.float32)
    out = out + b2_ref[...].astype(jnp.float32)         # (1, D) broadcasts

    o_ref[...] = (xf + out).astype(o_ref.dtype)         # fused residual


def prenorm_ffn_block(x, params, *, tile_r=256):
    """x: (B, P, N, D) -> (B, P, N, D) = x + FFN(LN(x))."""
    B, P, N, D = x.shape
    H = params["w1"].shape[1]
    R = B * P * N
    x2 = x.reshape(R, D)

    tile_r = min(tile_r, _round_up(R, 8))
    R_pad = _round_up(R, tile_r)
    if R_pad != R:
        x2 = jnp.pad(x2, ((0, R_pad - R), (0, 0)))

    out2 = pl.pallas_call(
        ffn_kernel,
        out_shape=jax.ShapeDtypeStruct((R_pad, D), x.dtype),
        grid_spec=pltpu.PrefetchScalarGridSpec(
            num_scalar_prefetch=0,
            grid=(R_pad // tile_r,),
            in_specs=[
                pl.BlockSpec((tile_r, D), lambda i: (i, 0)),   # x (streamed)
                pl.BlockSpec((1, D), lambda i: (0, 0)),        # gamma (resident)
                pl.BlockSpec((1, D), lambda i: (0, 0)),        # beta
                pl.BlockSpec((D, H), lambda i: (0, 0)),        # W1
                pl.BlockSpec((1, H), lambda i: (0, 0)),        # b1
                pl.BlockSpec((H, D), lambda i: (0, 0)),        # W2
                pl.BlockSpec((1, D), lambda i: (0, 0)),        # b2
            ],
            out_specs=pl.BlockSpec((tile_r, D), lambda i: (i, 0)),
        ),
        compiler_params=pltpu.CompilerParams(
            dimension_semantics=("parallel",)),
    )(x2, params["ln_gamma"], params["ln_beta"],
      params["w1"], params["b1"], params["w2"], params["b2"])

    return out2[:R].reshape(B, P, N, D)


# ---------------------------------------------------------------------------
# Full Transformer forward
# ---------------------------------------------------------------------------
def transformer_forward(x, layers, *, heads, head_dim, tile_p=8, tile_r=256):
    out = x
    for layer in layers:
        out = prenorm_attention_block(out, layer["attn"], heads=heads,
                                      head_dim=head_dim, tile_p=tile_p)
        out = prenorm_ffn_block(out, layer["ffn"], tile_r=tile_r)
    return out


# ---------------------------------------------------------------------------
# Pure-JAX reference (mirrors the PyTorch module)
# ---------------------------------------------------------------------------
def reference_transformer(x, layers, *, heads, head_dim):
    def ln(v, g, b):
        m = jnp.mean(v, axis=-1, keepdims=True)
        var = jnp.mean((v - m) ** 2, axis=-1, keepdims=True)
        return (v - m) / jnp.sqrt(var + LN_EPS) * g[0] + b[0]

    scale = head_dim ** (-0.5)
    inner = heads * head_dim
    out = x
    for layer in layers:
        ap = layer["attn"]
        y = ln(out, ap["ln_gamma"], ap["ln_beta"])
        qkv = y @ ap["wqkv"]
        q, k, v = jnp.split(qkv, 3, axis=-1)
        B, P, N, _ = q.shape

        def split_heads(t):
            return t.reshape(B, P, N, heads, head_dim).transpose(0, 1, 3, 2, 4)

        qh, kh, vh = map(split_heads, (q, k, v))
        dots = jnp.einsum('bphnd,bphmd->bphnm', qh, kh) * scale
        attn = jax.nn.softmax(dots, axis=-1)
        o = jnp.einsum('bphnm,bphmd->bphnd', attn, vh)
        o = o.transpose(0, 1, 3, 2, 4).reshape(B, P, N, inner)
        out = out + (o @ ap["wo"] + ap["bo"][0])

        fp = layer["ffn"]
        y = ln(out, fp["ln_gamma"], fp["ln_beta"])
        h = y @ fp["w1"] + fp["b1"][0]
        h = h * jax.nn.sigmoid(h)
        out = out + (h @ fp["w2"] + fp["b2"][0])
    return out


if __name__ == "__main__":
    # Small shapes consistent with the module: x is (B, P, N, dim)
    B, P, N, D = 2, 4, 8, 32
    heads, head_dim, mlp_dim, depth = 2, 16, 64, 2
    inner = heads * head_dim

    key = jax.random.PRNGKey(0)
    key, kx = jax.random.split(key)
    x = jax.random.normal(kx, (B, P, N, D), dtype=jnp.float32)

    layers = []
    for _ in range(depth):
        key, k1, k2, k3, k4, k5, k6, k7, k8, k9, k10, k11 = jax.random.split(key, 12)
        attn = dict(
            ln_gamma=1.0 + 0.1 * jax.random.normal(k1, (1, D), jnp.float32),
            ln_beta=0.1 * jax.random.normal(k2, (1, D), jnp.float32),
            wqkv=jax.random.normal(k3, (D, 3 * inner), jnp.float32) / jnp.sqrt(D),
            wo=jax.random.normal(k4, (inner, D), jnp.float32) / jnp.sqrt(inner),
            bo=0.1 * jax.random.normal(k5, (1, D), jnp.float32),
        )
        ffn = dict(
            ln_gamma=1.0 + 0.1 * jax.random.normal(k6, (1, D), jnp.float32),
            ln_beta=0.1 * jax.random.normal(k7, (1, D), jnp.float32),
            w1=jax.random.normal(k8, (D, mlp_dim), jnp.float32) / jnp.sqrt(D),
            b1=0.1 * jax.random.normal(k9, (1, mlp_dim), jnp.float32),
            w2=jax.random.normal(k10, (mlp_dim, D), jnp.float32) / jnp.sqrt(mlp_dim),
            b2=0.1 * jax.random.normal(k11, (1, D), jnp.float32),
        )
        layers.append({"attn": attn, "ffn": ffn})

    # Small tiles here just to exercise multi-step grids; production tiles are
    # larger (size against VMEM per generation: v7x 64 MiB, v5e/v6e 128 MiB).
    out = transformer_forward(x, layers, heads=heads, head_dim=head_dim,
                              tile_p=4, tile_r=32)
    out = jax.block_until_ready(out)

    ref = reference_transformer(x, layers, heads=heads, head_dim=head_dim)
    assert out.shape == x.shape
    max_err = float(jnp.max(jnp.abs(out - ref)))
    assert jnp.allclose(out, ref, atol=2e-4, rtol=2e-4), \
        f"mismatch vs reference, max abs err {max_err:.3e}"

    print("KERNEL_OK")
</pallas_src>

<mosaic_0001>
module attributes {stable_mosaic.version = 11 : i64} {
  func.func @attn_kernel(%arg0: i32, %arg1: memref<4x8x32xf32, #tpu.memory_space<vmem>>, %arg2: memref<1x32xf32, #tpu.memory_space<vmem>>, %arg3: memref<1x32xf32, #tpu.memory_space<vmem>>, %arg4: memref<32x96xf32, #tpu.memory_space<vmem>>, %arg5: memref<32x32xf32, #tpu.memory_space<vmem>>, %arg6: memref<1x32xf32, #tpu.memory_space<vmem>>, %arg7: memref<4x8x32xf32, #tpu.memory_space<vmem>>) attributes {dimension_semantics = [#tpu.dimension_semantics<parallel>], iteration_bounds = array<i64: 2>, scalar_prefetch = 0 : i64, scratch_operands = 0 : i64, tpu.core_type = #tpu.core_type<tc>, window_params = [{transform_indices = @transform_0, window_bounds = array<i64: 4, 8, 32>}, {pipeline_mode = #tpu.pipeline_mode<synchronous>, transform_indices = @transform_1, window_bounds = array<i64: 1, 32>}, {pipeline_mode = #tpu.pipeline_mode<synchronous>, transform_indices = @transform_2, window_bounds = array<i64: 1, 32>}, {pipeline_mode = #tpu.pipeline_mode<synchronous>, transform_indices = @transform_3, window_bounds = array<i64: 32, 96>}, {pipeline_mode = #tpu.pipeline_mode<synchronous>, transform_indices = @transform_4, window_bounds = array<i64: 32, 32>}, {pipeline_mode = #tpu.pipeline_mode<synchronous>, transform_indices = @transform_5, window_bounds = array<i64: 1, 32>}, {transform_indices = @transform_6, window_bounds = array<i64: 4, 8, 32>}]} {
    %c0 = arith.constant 0 : index
    %c0_0 = arith.constant 0 : index
    %c0_1 = arith.constant 0 : index
    %0 = vector.load %arg1[%c0, %c0_0, %c0_1] : memref<4x8x32xf32, #tpu.memory_space<vmem>>, vector<4x8x32xf32>
    %cst = arith.constant dense<0.000000e+00> : vector<4x8xf32>
    %1 = vector.multi_reduction <add>, %0, %cst [2] : vector<4x8x32xf32> to vector<4x8xf32>
    %2 = vector.shape_cast %1 : vector<4x8xf32> to vector<4x8x1xf32>
    %cst_2 = arith.constant 3.200000e+01 : f32
    %3 = vector.broadcast %cst_2 : f32 to vector<4x8x1xf32>
    %4 = arith.divf %2, %3 : vector<4x8x1xf32>
    %5 = vector.broadcast %4 : vector<4x8x1xf32> to vector<4x8x32xf32>
    %6 = arith.subf %0, %5 : vector<4x8x32xf32>
    %7 = arith.mulf %6, %6 : vector<4x8x32xf32>
    %cst_3 = arith.constant dense<0.000000e+00> : vector<4x8xf32>
    %8 = vector.multi_reduction <add>, %7, %cst_3 [2] : vector<4x8x32xf32> to vector<4x8xf32>
    %9 = vector.shape_cast %8 : vector<4x8xf32> to vector<4x8x1xf32>
    %cst_4 = arith.constant 3.200000e+01 : f32
    %10 = vector.broadcast %cst_4 : f32 to vector<4x8x1xf32>
    %11 = arith.divf %9, %10 : vector<4x8x1xf32>
    %cst_5 = arith.constant 9.99999974E-6 : f32
    %12 = vector.broadcast %cst_5 : f32 to vector<4x8x1xf32>
    %13 = arith.addf %11, %12 : vector<4x8x1xf32>
    %14 = math.rsqrt %13 : vector<4x8x1xf32>
    %15 = vector.broadcast %14 : vector<4x8x1xf32> to vector<4x8x32xf32>
    %16 = arith.mulf %6, %15 : vector<4x8x32xf32>
    %c0_6 = arith.constant 0 : index
    %c0_7 = arith.constant 0 : index
    %17 = vector.load %arg2[%c0_6, %c0_7] : memref<1x32xf32, #tpu.memory_space<vmem>>, vector<1x32xf32>
    %18 = vector.shape_cast %17 : vector<1x32xf32> to vector<1x1x32xf32>
    %19 = vector.broadcast %18 : vector<1x1x32xf32> to vector<4x8x32xf32>
    %20 = arith.mulf %16, %19 : vector<4x8x32xf32>
    %c0_8 = arith.constant 0 : index
    %c0_9 = arith.constant 0 : index
    %21 = vector.load %arg3[%c0_8, %c0_9] : memref<1x32xf32, #tpu.memory_space<vmem>>, vector<1x32xf32>
    %22 = vector.shape_cast %21 : vector<1x32xf32> to vector<1x1x32xf32>
    %23 = vector.broadcast %22 : vector<1x1x32xf32> to vector<4x8x32xf32>
    %24 = arith.addf %20, %23 : vector<4x8x32xf32>
    %25 = vector.shape_cast %24 : vector<4x8x32xf32> to vector<32x32xf32>
    %c0_10 = arith.constant 0 : index
    %c0_11 = arith.constant 0 : index
    %26 = vector.load %arg4[%c0_10, %c0_11] : memref<32x96xf32, #tpu.memory_space<vmem>>, vector<32x96xf32>
    %cst_12 = arith.constant dense<0.000000e+00> : vector<32x96xf32>
    %27 = tpu.matmul %25, %26, %cst_12 {dimension_numbers = #tpu.dot_dimension_numbers<[1], [0], [0], [1], [0, 0, 1, 1], [], []>} : vector<32x32xf32>, vector<32x96xf32>, vector<32x96xf32> -> vector<32x96xf32>
    %28 = vector.shape_cast %27 : vector<32x96xf32> to vector<4x8x96xf32>
    %29 = vector.extract_strided_slice %28 {offsets = [0, 0, 0], sizes = [4, 8, 16], strides = [1, 1, 1]} : vector<4x8x96xf32> to vector<4x8x16xf32>
    %30 = vector.extract_strided_slice %28 {offsets = [0, 0, 32], sizes = [4, 8, 16], strides = [1, 1, 1]} : vector<4x8x96xf32> to vector<4x8x16xf32>
    %31 = vector.extract_strided_slice %28 {offsets = [0, 0, 64], sizes = [4, 8, 16], strides = [1, 1, 1]} : vector<4x8x96xf32> to vector<4x8x16xf32>
    "tpu.trace_start"() <{level = 10 : i32, message = "tnd,tmd->tnm"}> : () -> ()
    %cst_13 = arith.constant dense<0.000000e+00> : vector<4x8x8xf32>
    %32 = tpu.matmul %29, %30, %cst_13 {dimension_numbers = #tpu.dot_dimension_numbers<[2], [2], [1], [1], [0, 0, 0, 1, 1, 1], [0], [0]>} : vector<4x8x16xf32>, vector<4x8x16xf32>, vector<4x8x8xf32> -> vector<4x8x8xf32>
    "tpu.trace_stop"() : () -> ()
    %cst_14 = arith.constant 2.500000e-01 : f32
    %33 = vector.broadcast %cst_14 : f32 to vector<4x8x8xf32>
    %34 = arith.mulf %32, %33 : vector<4x8x8xf32>
    %cst_15 = arith.constant dense<0xFF800000> : vector<4x8xf32>
    %35 = vector.multi_reduction <maximumf>, %34, %cst_15 [2] : vector<4x8x8xf32> to vector<4x8xf32>
    %36 = vector.shape_cast %35 : vector<4x8xf32> to vector<4x8x1xf32>
    %37 = vector.broadcast %36 : vector<4x8x1xf32> to vector<4x8x8xf32>
    %38 = arith.subf %34, %37 : vector<4x8x8xf32>
    %39 = math.exp %38 : vector<4x8x8xf32>
    %cst_16 = arith.constant dense<0.000000e+00> : vector<4x8xf32>
    %40 = vector.multi_reduction <add>, %39, %cst_16 [2] : vector<4x8x8xf32> to vector<4x8xf32>
    %41 = vector.shape_cast %40 : vector<4x8xf32> to vector<4x8x1xf32>
    %42 = vector.broadcast %41 : vector<4x8x1xf32> to vector<4x8x8xf32>
    %43 = arith.divf %39, %42 : vector<4x8x8xf32>
    "tpu.trace_start"() <{level = 10 : i32, message = "tnm,tmd->tnd"}> : () -> ()
    %cst_17 = arith.constant dense<0.000000e+00> : vector<4x8x16xf32>
    %44 = tpu.matmul %43, %31, %cst_17 {dimension_numbers = #tpu.dot_dimension_numbers<[2], [1], [1], [2], [0, 0, 0, 1, 1, 2], [0], [0]>} : vector<4x8x8xf32>, vector<4x8x16xf32>, vector<4x8x16xf32> -> vector<4x8x16xf32>
    "tpu.trace_stop"() : () -> ()
    %45 = vector.extract_strided_slice %28 {offsets = [0, 0, 16], sizes = [4, 8, 16], strides = [1, 1, 1]} : vector<4x8x96xf32> to vector<4x8x16xf32>
    %46 = vector.extract_strided_slice %28 {offsets = [0, 0, 48], sizes = [4, 8, 16], strides = [1, 1, 1]} : vector<4x8x96xf32> to vector<4x8x16xf32>
    %47 = vector.extract_strided_slice %28 {offsets = [0, 0, 80], sizes = [4, 8, 16], strides = [1, 1, 1]} : vector<4x8x96xf32> to vector<4x8x16xf32>
    "tpu.trace_start"() <{level = 10 : i32, message = "tnd,tmd->tnm"}> : () -> ()
    %cst_18 = arith.constant dense<0.000000e+00> : vector<4x8x8xf32>
    %48 = tpu.matmul %45, %46, %cst_18 {dimension_numbers = #tpu.dot_dimension_numbers<[2], [2], [1], [1], [0, 0, 0, 1, 1, 1], [0], [0]>} : vector<4x8x16xf32>, vector<4x8x16xf32>, vector<4x8x8xf32> -> vector<4x8x8xf32>
    "tpu.trace_stop"() : () -> ()
    %cst_19 = arith.constant 2.500000e-01 : f32
    %49 = vector.broadcast %cst_19 : f32 to vector<4x8x8xf32>
    %50 = arith.mulf %48, %49 : vector<4x8x8xf32>
    %cst_20 = arith.constant dense<0xFF800000> : vector<4x8xf32>
    %51 = vector.multi_reduction <maximumf>, %50, %cst_20 [2] : vector<4x8x8xf32> to vector<4x8xf32>
    %52 = vector.shape_cast %51 : vector<4x8xf32> to vector<4x8x1xf32>
    %53 = vector.broadcast %52 : vector<4x8x1xf32> to vector<4x8x8xf32>
    %54 = arith.subf %50, %53 : vector<4x8x8xf32>
    %55 = math.exp %54 : vector<4x8x8xf32>
    %cst_21 = arith.constant dense<0.000000e+00> : vector<4x8xf32>
    %56 = vector.multi_reduction <add>, %55, %cst_21 [2] : vector<4x8x8xf32> to vector<4x8xf32>
    %57 = vector.shape_cast %56 : vector<4x8xf32> to vector<4x8x1xf32>
    %58 = vector.broadcast %57 : vector<4x8x1xf32> to vector<4x8x8xf32>
    %59 = arith.divf %55, %58 : vector<4x8x8xf32>
    "tpu.trace_start"() <{level = 10 : i32, message = "tnm,tmd->tnd"}> : () -> ()
    %cst_22 = arith.constant dense<0.000000e+00> : vector<4x8x16xf32>
    %60 = tpu.matmul %59, %47, %cst_22 {dimension_numbers = #tpu.dot_dimension_numbers<[2], [1], [1], [2], [0, 0, 0, 1, 1, 2], [0], [0]>} : vector<4x8x8xf32>, vector<4x8x16xf32>, vector<4x8x16xf32> -> vector<4x8x16xf32>
    "tpu.trace_stop"() : () -> ()
    %61 = tpu.concatenate %44, %60 in 2 : vector<4x8x16xf32>, vector<4x8x16xf32> -> vector<4x8x32xf32>
    %62 = vector.shape_cast %61 : vector<4x8x32xf32> to vector<32x32xf32>
    %c0_23 = arith.constant 0 : index
    %c0_24 = arith.constant 0 : index
    %63 = vector.load %arg5[%c0_23, %c0_24] : memref<32x32xf32, #tpu.memory_space<vmem>>, vector<32x32xf32>
    %cst_25 = arith.constant dense<0.000000e+00> : vector<32x32xf32>
    %64 = tpu.matmul %62, %63, %cst_25 {dimension_numbers = #tpu.dot_dimension_numbers<[1], [0], [0], [1], [0, 0, 1, 1], [], []>} : vector<32x32xf32>, vector<32x32xf32>, vector<32x32xf32> -> vector<32x32xf32>
    %65 = vector.shape_cast %64 : vector<32x32xf32> to vector<4x8x32xf32>
    %c0_26 = arith.constant 0 : index
    %c0_27 = arith.constant 0 : index
    %66 = vector.load %arg6[%c0_26, %c0_27] : memref<1x32xf32, #tpu.memory_space<vmem>>, vector<1x32xf32>
    %67 = vector.shape_cast %66 : vector<1x32xf32> to vector<1x1x32xf32>
    %68 = vector.broadcast %67 : vector<1x1x32xf32> to vector<4x8x32xf32>
    %69 = arith.addf %65, %68 : vector<4x8x32xf32>
    %70 = arith.addf %0, %69 : vector<4x8x32xf32>
    %c0_28 = arith.constant 0 : index
    %c0_29 = arith.constant 0 : index
    %c0_30 = arith.constant 0 : index
    %71 = vector.load %arg7[%c0_28, %c0_29, %c0_30] : memref<4x8x32xf32, #tpu.memory_space<vmem>>, vector<4x8x32xf32>
    tpu.vector_store %arg7[%c0_28, %c0_29, %c0_30], %70 {strides = array<i32>} : memref<4x8x32xf32, #tpu.memory_space<vmem>>, vector<4x8x32xf32>,
    return
  }
  func.func @transform_0(%arg0: i32) -> (i32, i32, i32) {
    %c0_i32 = arith.constant 0 : i32
    %c0_i32_0 = arith.constant 0 : i32
    %c0_i32_1 = arith.constant 0 : i32
    return %arg0, %c0_i32, %c0_i32_0 : i32, i32, i32
  }
  func.func @transform_1(%arg0: i32) -> (i32, i32) {
    %c0_i32 = arith.constant 0 : i32
    %c0_i32_0 = arith.constant 0 : i32
    %c0_i32_1 = arith.constant 0 : i32
    return %c0_i32, %c0_i32_0 : i32, i32
  }
  func.func @transform_2(%arg0: i32) -> (i32, i32) {
    %c0_i32 = arith.constant 0 : i32
    %c0_i32_0 = arith.constant 0 : i32
    %c0_i32_1 = arith.constant 0 : i32
    return %c0_i32, %c0_i32_0 : i32, i32
  }
  func.func @transform_3(%arg0: i32) -> (i32, i32) {
    %c0_i32 = arith.constant 0 : i32
    %c0_i32_0 = arith.constant 0 : i32
    %c0_i32_1 = arith.constant 0 : i32
    return %c0_i32, %c0_i32_0 : i32, i32
  }
  func.func @transform_4(%arg0: i32) -> (i32, i32) {
    %c0_i32 = arith.constant 0 : i32
    %c0_i32_0 = arith.constant 0 : i32
    %c0_i32_1 = arith.constant 0 : i32
    return %c0_i32, %c0_i32_0 : i32, i32
  }
  func.func @transform_5(%arg0: i32) -> (i32, i32) {
    %c0_i32 = arith.constant 0 : i32
    %c0_i32_0 = arith.constant 0 : i32
    %c0_i32_1 = arith.constant 0 : i32
    return %c0_i32, %c0_i32_0 : i32, i32
  }
  func.func @transform_6(%arg0: i32) -> (i32, i32, i32) {
    %c0_i32 = arith.constant 0 : i32
    %c0_i32_0 = arith.constant 0 : i32
    %c0_i32_1 = arith.constant 0 : i32
    return %arg0, %c0_i32, %c0_i32_0 : i32, i32, i32
  }
}

</mosaic_0001>

<llo_original>
// kernel: tpu_custom_call.1
$region0: #{tpu_custom_call.1}
  #allocation0 [shape = 'u32[]', space=smem, size = 0x4, offset = 0x4, fixed_abs, tag = 'smem constant byte address 0x4 - core index']
  #allocation1 [shape = 'u32[72,128]{1,0:T(1,128)}', space=vmem, size = 0x9000, scoped, tag = 'internal scratch']
  %s0 = inlined_call_operand.hbm [shape: f32[8,8,32], index: 0, kind: input, shape index: {}]
  %s1 = inlined_call_operand.hbm [shape: f32[1,32], index: 1, kind: input, shape index: {}]
  %s2 = inlined_call_operand.vmem [shape: f32[1,32], index: 2, kind: input, shape index: {}]
  %s3 = inlined_call_operand.hbm [shape: f32[32,96], index: 3, kind: input, shape index: {}]
  %s4 = inlined_call_operand.hbm [shape: f32[32,32], index: 4, kind: input, shape index: {}]
  %s5 = inlined_call_operand.vmem [shape: f32[1,32], index: 5, kind: input, shape index: {}]
  %s6 = inlined_call_operand.hbm [shape: f32[8,8,32], index: 6, kind: output, shape index: {}]
  %s7 = sld [smem:[#allocation0]]
  $region73: #{tpu_custom_call.1} parent=0
    _
  %s9 = ssub.s32 1, %s7
  %s10 = scalar_select 0, %s9, %s7
  $region1: #{tpu_custom_call.1} parent=0
    #allocation2 [shape = 'u8[32768]{0}', space=vmem, size = 0x8000, scoped, tag = 'input window, operand 0']
    #allocation3 [shape = 's32[2]{0}', space=sflag, size = 0x8, scoped, tag = 'scoped memory for tpu_custom_call.1']
    #allocation4 [shape = 's32[2]{0}', space=sflag, size = 0x8, scoped, tag = 'scoped memory for tpu_custom_call.1']
    #allocation5 [shape = 'u8[512]{0}', space=vmem, size = 0x400, scoped, tag = 'input window, operand 1, single buffered']
    #allocation6 [shape = 's32[1]{0}', space=sflag, size = 0x4, scoped, tag = 'scoped memory for tpu_custom_call.1']
    #allocation7 [shape = 'u8[16384]{0}', space=vmem, size = 0x4000, scoped, tag = 'input window, operand 3, single buffered']
    #allocation8 [shape = 'u8[16384]{0}', space=vmem, size = 0x4000, scoped, tag = 'input window, operand 4, single buffered']
    #allocation9 [shape = 's32[1]{0}', space=sflag, size = 0x4, scoped, tag = 'scoped memory for tpu_custom_call.1']
    #allocation10 [shape = 'u8[32768]{0}', space=vmem, size = 0x8000, scoped, tag = 'output window, operand 0']
    %11 = vsyncpa [#allocation3], 0
    %s12 = scalar_lea.sflag [#allocation3], 1
    %13 = vsyncpa %s12, 0
    %14 = vsyncpa [#allocation6], 0
    %15 = vsyncpa [#allocation9], 0
    %16 = vsyncpa [#allocation4], 0
    %s17 = scalar_lea.sflag [#allocation4], 1
    %18 = vsyncpa %s17, 0
    loop: start=0, step=1, limit=4
    $region2: #{tpu_custom_call.1} parent=1 // loop_pre_header
      _
    $region3: #{tpu_custom_call.1} parent=1 // loop_header
      %s20 = sphi 0, %s24
      %p21 = scmp.ge.s32.totalorder %s20, 4
      %s30 = sphi 0, %s32
      %s33 = sphi 0, %s30
      %s34 = sphi 0, %s33
      %s50 = sphi 0, %s34
      %s54 = sphi 0, %s54
      %s56 = sphi 0, %s54
      %s57 = sphi 0, %s56
      %s71 = sphi 0, %s57
      %s75 = sphi 0, %s75
      %s77 = sphi 0, %s75
      %s78 = sphi 0, %s77
      %s92 = sphi 0, %s78
      %s96 = sphi 0, %s96
      %s98 = sphi 0, %s96
      %s99 = sphi 0, %s98
      %s113 = sphi 0, %s99
      %s117 = sphi 0, %s117
      %s119 = sphi 0, %s117
      %s120 = sphi 0, %s119
      %s134 = sphi 0, %s120
      %s138 = sphi 0, %s138
      %s140 = sphi 0, %s138
      %s141 = sphi 0, %s140
      %s155 = sphi 0, %s141
      %s161 = sphi 0, %s163
      %s164 = sphi 0, %s161
      %s165 = sphi 0, %s164
      %s181 = sphi 0, %s165
    $region4: #{tpu_custom_call.1} parent=1 // loop_header_branch
      %23 = sbr.rel (%p21) target = $region8
    $region5: #{tpu_custom_call.1} parent=1 // loop_body
      %s25 = ssub.s32 %s20, 1
      %s26 = ssub.s32 %s20, 2
      %s27 = sadd.s32 %s20, 1
      %s28 = ssub.s32 %s20, %s27
      %p29 = scmp.eq.s32.totalorder %s28, 0
      %s31 = sadd.s32 %s30, 1
      %s32 = scalar_select %p29, %s30, %s31
      %p35 = pneg %p29
      %p36 = scmp.eq.s32.totalorder %s20, 1
      %p37 = por %p35, %p36
      %p38 = scmp.ne.s32.totalorder %s30, %s33
      %p39 = scmp.eq.s32.totalorder %s20, 0
      %p40 = por %p38, %p39
      %p41 = scmp.ne.s32.totalorder %s30, %s33
      %p42 = scmp.eq.s32.totalorder %s25, 1
      %p43 = por %p41, %p42
      %p44 = scmp.ne.s32.totalorder %s33, %s34
      %p45 = scmp.eq.s32.totalorder %s25, 0
      %p46 = por %p44, %p45
      %p47 = scmp.ne.s32.totalorder %s33, %s34
      %p48 = scmp.eq.s32.totalorder %s26, 1
      %p49 = por %p47, %p48
      %p51 = scmp.ne.s32.totalorder %s34, %s50
      %p52 = scmp.eq.s32.totalorder %s26, 0
      %p53 = por %p51, %p52
      %s55 = sadd.s32 %s54, 1
      %p58 = scmp.eq.s32.totalorder %s20, 1
      %p59 = scmp.ne.s32.totalorder %s54, %s56
      %p60 = scmp.eq.s32.totalorder %s20, 0
      %p61 = por %p59, %p60
      %p62 = scmp.ne.s32.totalorder %s54, %s56
      %p63 = scmp.eq.s32.totalorder %s25, 1
      %p64 = por %p62, %p63
      %p65 = scmp.ne.s32.totalorder %s56, %s57
      %p66 = scmp.eq.s32.totalorder %s25, 0
      %p67 = por %p65, %p66
      %p68 = scmp.ne.s32.totalorder %s56, %s57
      %p69 = scmp.eq.s32.totalorder %s26, 1
      %p70 = por %p68, %p69
      %p72 = scmp.ne.s32.totalorder %s57, %s71
      %p73 = scmp.eq.s32.totalorder %s26, 0
      %p74 = por %p72, %p73
      %s76 = sadd.s32 %s75, 1
      %p79 = scmp.eq.s32.totalorder %s20, 1
      %p80 = scmp.ne.s32.totalorder %s75, %s77
      %p81 = scmp.eq.s32.totalorder %s20, 0
      %p82 = por %p80, %p81
      %p83 = scmp.ne.s32.totalorder %s75, %s77
      %p84 = scmp.eq.s32.totalorder %s25, 1
      %p85 = por %p83, %p84
      %p86 = scmp.ne.s32.totalorder %s77, %s78
      %p87 = scmp.eq.s32.totalorder %s25, 0
      %p88 = por %p86, %p87
      %p89 = scmp.ne.s32.totalorder %s77, %s78
      %p90 = scmp.eq.s32.totalorder %s26, 1
      %p91 = por %p89, %p90
      %p93 = scmp.ne.s32.totalorder %s78, %s92
      %p94 = scmp.eq.s32.totalorder %s26, 0
      %p95 = por %p93, %p94
      %s97 = sadd.s32 %s96, 1
      %p100 = scmp.eq.s32.totalorder %s20, 1
      %p101 = scmp.ne.s32.totalorder %s96, %s98
      %p102 = scmp.eq.s32.totalorder %s20, 0
      %p103 = por %p101, %p102
      %p104 = scmp.ne.s32.totalorder %s96, %s98
      %p105 = scmp.eq.s32.totalorder %s25, 1
      %p106 = por %p104, %p105
      %p107 = scmp.ne.s32.totalorder %s98, %s99
      %p108 = scmp.eq.s32.totalorder %s25, 0
      %p109 = por %p107, %p108
      %p110 = scmp.ne.s32.totalorder %s98, %s99
      %p111 = scmp.eq.s32.totalorder %s26, 1
      %p112 = por %p110, %p111
      %p114 = scmp.ne.s32.totalorder %s99, %s113
      %p115 = scmp.eq.s32.totalorder %s26, 0
      %p116 = por %p114, %p115
      %s118 = sadd.s32 %s117, 1
      %p121 = scmp.eq.s32.totalorder %s20, 1
      %p122 = scmp.ne.s32.totalorder %s117, %s119
      %p123 = scmp.eq.s32.totalorder %s20, 0
      %p124 = por %p122, %p123
      %p125 = scmp.ne.s32.totalorder %s117, %s119
      %p126 = scmp.eq.s32.totalorder %s25, 1
      %p127 = por %p125, %p126
      %p128 = scmp.ne.s32.totalorder %s119, %s120
      %p129 = scmp.eq.s32.totalorder %s25, 0
      %p130 = por %p128, %p129
      %p131 = scmp.ne.s32.totalorder %s119, %s120
      %p132 = scmp.eq.s32.totalorder %s26, 1
      %p133 = por %p131, %p132
      %p135 = scmp.ne.s32.totalorder %s120, %s134
      %p136 = scmp.eq.s32.totalorder %s26, 0
      %p137 = por %p135, %p136
      %s139 = sadd.s32 %s138, 1
      %p142 = scmp.eq.s32.totalorder %s20, 1
      %p143 = scmp.ne.s32.totalorder %s138, %s140
      %p144 = scmp.eq.s32.totalorder %s20, 0
      %p145 = por %p143, %p144
      %p146 = scmp.ne.s32.totalorder %s138, %s140
      %p147 = scmp.eq.s32.totalorder %s25, 1
      %p148 = por %p146, %p147
      %p149 = scmp.ne.s32.totalorder %s140, %s141
      %p150 = scmp.eq.s32.totalorder %s25, 0
      %p151 = por %p149, %p150
      %p152 = scmp.ne.s32.totalorder %s140, %s141
      %p153 = scmp.eq.s32.totalorder %s26, 1
      %p154 = por %p152, %p153
      %p156 = scmp.ne.s32.totalorder %s141, %s155
      %p157 = scmp.eq.s32.totalorder %s26, 0
      %p158 = por %p156, %p157
      %s159 = ssub.s32 %s20, %s27
      %p160 = scmp.eq.s32.totalorder %s159, 0
      %s162 = sadd.s32 %s161, 1
      %s163 = scalar_select %p160, %s161, %s162
      %p166 = pneg %p160
      %p167 = scmp.eq.s32.totalorder %s20, 1
      %p168 = por %p166, %p167
      %p169 = scmp.ne.s32.totalorder %s161, %s164
      %p170 = scmp.eq.s32.totalorder %s20, 0
      %p171 = por %p169, %p170
      %p172 = scmp.ne.s32.totalorder %s161, %s164
      %p173 = scmp.eq.s32.totalorder %s25, 1
      %p174 = por %p172, %p173
      %p175 = scmp.ne.s32.totalorder %s164, %s165
      %p176 = scmp.eq.s32.totalorder %s25, 0
      %p177 = por %p175, %p176
      %p178 = scmp.ne.s32.totalorder %s164, %s165
      %p179 = scmp.eq.s32.totalorder %s26, 1
      %p180 = por %p178, %p179
      %p182 = scmp.ne.s32.totalorder %s165, %s181
      %p183 = scmp.eq.s32.totalorder %s26, 0
      %p184 = por %p182, %p183
      %p185 = scmp.le.s32.totalorder 1, %s20
      %p186 = scmp.lt.s32.totalorder %s20, 3
      %p187 = pnand %p185, %p186
      %p188 = pneg %p187
      // Predicated region
      $region9: #{tpu_custom_call.1} parent=5 // pred_check
        _
      $region10: #{tpu_custom_call.1} parent=5 // pred_check_branch
        %190 = sbr.rel (%p187) target = $region12
      $region11: #{tpu_custom_call.1} parent=5 // pred_region
        %s191 = ssub.s32 %s20, 1
        // Predicated region
        $region13: #{tpu_custom_call.1} parent=11 // pred_check
          %p192 = pneg %p67
        $region14: #{tpu_custom_call.1} parent=11 // pred_check_branch
          %194 = sbr.rel (%p192) target = $region16
        $region15: #{tpu_custom_call.1} parent=11 // pred_region
          %196 = vsyncadd [#allocation6], 0
          %s198 = sshll.u32 %s1, 4
          %s199 = int_to_ptr.hbm [resolvable:$true] %s198
          %s200 = sshll.u32 [#allocation5], 4
          %s201 = int_to_ptr.vmem [resolvable:$true] %s200
          %203 = dma.hbm_to_vmem [thread:$0]  %s199, 16, %s201, [#allocation6]
        $region16: #{tpu_custom_call.1} parent=11 // pred_fallthru
          _
        // Predicated region
        $region17: #{tpu_custom_call.1} parent=11 // pred_check
          %p204 = pneg %p88
        $region18: #{tpu_custom_call.1} parent=11 // pred_check_branch
          %206 = sbr.rel (%p204) target = $region20
        $region19: #{tpu_custom_call.1} parent=11 // pred_region
          _
        $region20: #{tpu_custom_call.1} parent=11 // pred_fallthru
          _
        // Predicated region
        $region21: #{tpu_custom_call.1} parent=11 // pred_check
          %p207 = pneg %p109
        $region22: #{tpu_custom_call.1} parent=11 // pred_check_branch
          %209 = sbr.rel (%p207) target = $region24
        $region23: #{tpu_custom_call.1} parent=11 // pred_region
          %211 = vsyncadd [#allocation6], 0
          %s212 = sshll.u32 %s3, 4
          %s213 = int_to_ptr.hbm [resolvable:$true] %s212
          %s214 = sshll.u32 [#allocation7], 4
          %s215 = int_to_ptr.vmem [resolvable:$true] %s214
          %220 = dma.hbm_to_vmem [thread:$0]  %s213, 512, %s215, [#allocation6], 128, 128, 8
        $region24: #{tpu_custom_call.1} parent=11 // pred_fallthru
          _
        // Predicated region
        $region25: #{tpu_custom_call.1} parent=11 // pred_check
          %p221 = pneg %p130
        $region26: #{tpu_custom_call.1} parent=11 // pred_check_branch
          %223 = sbr.rel (%p221) target = $region28
        $region27: #{tpu_custom_call.1} parent=11 // pred_region
          %225 = vsyncadd [#allocation9], 0
          %s226 = sshll.u32 %s4, 4
          %s227 = int_to_ptr.hbm [resolvable:$true] %s226
          %s228 = sshll.u32 [#allocation8], 4
          %s229 = int_to_ptr.vmem [resolvable:$true] %s228
          %234 = dma.hbm_to_vmem [thread:$0]  %s227, 512, %s229, [#allocation9], 128, 128, 8
        $region28: #{tpu_custom_call.1} parent=11 // pred_fallthru
          _
        // Predicated region
        $region29: #{tpu_custom_call.1} parent=11 // pred_check
          %p235 = pneg %p151
        $region30: #{tpu_custom_call.1} parent=11 // pred_check_branch
          %237 = sbr.rel (%p235) target = $region32
        $region31: #{tpu_custom_call.1} parent=11 // pred_region
          _
        $region32: #{tpu_custom_call.1} parent=11 // pred_fallthru
          _
      $region12: #{tpu_custom_call.1} parent=5 // pred_fallthru
        _
      %p238 = scmp.lt.s32.totalorder %s20, 2
      // Predicated region
      $region33: #{tpu_custom_call.1} parent=5 // pred_check
        %p239 = pneg %p238
      $region34: #{tpu_custom_call.1} parent=5 // pred_check_branch
        %241 = sbr.rel (%p239) target = $region36
      $region35: #{tpu_custom_call.1} parent=5 // pred_region
        // Predicated region
        $region37: #{tpu_custom_call.1} parent=35 // pred_check
          %p242 = pneg %p40
        $region38: #{tpu_custom_call.1} parent=35 // pred_check_branch
          %244 = sbr.rel (%p242) target = $region40
        $region39: #{tpu_custom_call.1} parent=35 // pred_region
          %s245 = sand.u32 %s30, 1
          %s246 = scalar_lea.sflag [#allocation3], %s245
          %s247 = sand.u32 %s30, 1
          %s248 = smul.addr %s247, 32
          %s249 = scalar_lea.vmem [#allocation2], %s248
          %s250 = smul.u32 4, %s20
          %252 = vsyncadd %s246, 0
          %s253 = smul.addr %s250, 8
          %s254 = scalar_lea.hbm %s0, %s253
          %s255 = sshll.u32 %s254, 4
          %s256 = int_to_ptr.hbm [resolvable:$true] %s255
          %s257 = sshll.u32 %s249, 4
          %s258 = int_to_ptr.vmem [resolvable:$true] %s257
          %263 = dma.hbm_to_vmem [thread:$0]  %s256, 512, %s258, %s246, 128, 128, 8
        $region40: #{tpu_custom_call.1} parent=35 // pred_fallthru
          _
      $region36: #{tpu_custom_call.1} parent=5 // pred_fallthru
        _
      %p264 = scmp.le.s32.totalorder 1, %s20
      %p265 = scmp.lt.s32.totalorder %s20, 3
      %p266 = pnand %p264, %p265
      %p267 = pneg %p266
      // Predicated region
      $region41: #{tpu_custom_call.1} parent=5 // pred_check
        _
      $region42: #{tpu_custom_call.1} parent=5 // pred_check_branch
        %269 = sbr.rel (%p266) target = $region44
      $region43: #{tpu_custom_call.1} parent=5 // pred_region
        %s270 = ssub.s32 %s20, 1
        %s271 = sand.u32 %s33, 1
        %s272 = scalar_lea.sflag [#allocation3], %s271
        %s273 = sand.u32 %s33, 1
        %s274 = smul.addr %s273, 32
        %s275 = scalar_lea.vmem [#allocation2], %s274
        // Predicated region
        $region45: #{tpu_custom_call.1} parent=43 // pred_check
          %p276 = pneg %p46
        $region46: #{tpu_custom_call.1} parent=43 // pred_check_branch
          %278 = sbr.rel (%p276) target = $region48
        $region47: #{tpu_custom_call.1} parent=43 // pred_region
          %280 = dma.done %s272, 512
        $region48: #{tpu_custom_call.1} parent=43 // pred_fallthru
          _
        // Predicated region
        $region49: #{tpu_custom_call.1} parent=43 // pred_check
          %p281 = pneg %p67
        $region50: #{tpu_custom_call.1} parent=43 // pred_check_branch
          %283 = sbr.rel (%p281) target = $region52
        $region51: #{tpu_custom_call.1} parent=43 // pred_region
          %285 = dma.done [#allocation6], 16
        $region52: #{tpu_custom_call.1} parent=43 // pred_fallthru
          _
        // Predicated region
        $region53: #{tpu_custom_call.1} parent=43 // pred_check
          %p286 = pneg %p109
        $region54: #{tpu_custom_call.1} parent=43 // pred_check_branch
          %288 = sbr.rel (%p286) target = $region56
        $region55: #{tpu_custom_call.1} parent=43 // pred_region
          %290 = dma.done [#allocation6], 512
        $region56: #{tpu_custom_call.1} parent=43 // pred_fallthru
          _
        // Predicated region
        $region57: #{tpu_custom_call.1} parent=43 // pred_check
          %p291 = pneg %p130
        $region58: #{tpu_custom_call.1} parent=43 // pred_check_branch
          %293 = sbr.rel (%p291) target = $region60
        $region59: #{tpu_custom_call.1} parent=43 // pred_region
          %295 = dma.done [#allocation9], 512
        $region60: #{tpu_custom_call.1} parent=43 // pred_fallthru
          _
        %s296 = sand.u32 %s33, 1
        %s297 = scalar_lea.sflag [#allocation3], %s296
        %s298 = sand.u32 %s33, 1
        %s299 = smul.addr %s298, 32
        %s300 = scalar_lea.vmem [#allocation2], %s299
        %p301 = pneg %p46
        %p302 = pneg %p43
        %p303 = pneg %p67
        %p304 = pneg %p64
        %p305 = pneg %p88
        %p306 = pneg %p85
        %p307 = pneg %p109
        %p308 = pneg %p106
        %p309 = pneg %p130
        %p310 = pneg %p127
        %p311 = pneg %p151
        %p312 = pneg %p148
        %p313 = pneg %p177
        %p314 = pneg %p174
        %s315 = sand.u32 %s164, 1
        %s316 = scalar_lea.sflag [#allocation4], %s315
        %s317 = sand.u32 %s164, 1
        %s318 = smul.addr %s317, 32
        %s319 = scalar_lea.vmem [#allocation10], %s318
        %s320 = smul.u32 4, %s25
        %s321 = smul.u32 4, %s25
        %v322 = vld [vmem:[%s275] sm:$0xff]
        %v323 = vld [vmem:[%s275 + $0x8] sm:$0xff]
        %v324 = vld [vmem:[%s275 + $0x10] sm:$0xff]
        %v325 = vld [vmem:[%s275 + $0x18] sm:$0xff]
        %vm326 = vcmask 261120
        %v327 = vsel %vm326, %v322, 0.0
        %328 = vadd.xlane.f32.xlu0 %v327
        %v329 = vpop.xlane.xlu0 %328
        %v330 = vsel %vm326, %v323, 0.0
        %331 = vadd.xlane.f32.xlu0 %v330
        %v332 = vpop.xlane.xlu0 %331
        %v333 = vsel %vm326, %v324, 0.0
        %334 = vadd.xlane.f32.xlu0 %v333
        %v335 = vpop.xlane.xlu0 %334
        %v336 = vsel %vm326, %v325, 0.0
        %337 = vadd.xlane.f32.xlu0 %v336
        %v338 = vpop.xlane.xlu0 %337
        %v339 = vrcp.pop 32.0
        %v340 = vmul.f32 32.0, %v339
        %v341 = vsub.f32 1.0, %v340
        %v342 = vmul.f32 %v339, %v341
        %v343 = vadd.f32 %v339, %v342
        %vm344 = vweird.f32 %v339
        %v345 = vsel %vm344, %v339, %v343
        %v346 = vmul.f32 %v329, %v345
        %v347 = vmul.f32 %v332, %v345
        %v348 = vmul.f32 %v335, %v345
        %v349 = vmul.f32 %v338, %v345
        %v350 = vsub.f32 %v322, %v346
        %v351 = vsub.f32 %v323, %v347
        %v352 = vsub.f32 %v324, %v348
        %v353 = vsub.f32 %v325, %v349
        %v354 = vmul.f32 %v350, %v350
        %v355 = vmul.f32 %v351, %v351
        %v356 = vmul.f32 %v352, %v352
        %v357 = vmul.f32 %v353, %v353
        %v358 = vsel %vm326, %v354, 0.0
        %359 = vadd.xlane.f32.xlu0 %v358
        %v360 = vpop.xlane.xlu0 %359
        %v361 = vsel %vm326, %v355, 0.0
        %362 = vadd.xlane.f32.xlu0 %v361
        %v363 = vpop.xlane.xlu0 %362
        %v364 = vsel %vm326, %v356, 0.0
        %365 = vadd.xlane.f32.xlu0 %v364
        %v366 = vpop.xlane.xlu0 %365
        %v367 = vsel %vm326, %v357, 0.0
        %368 = vadd.xlane.f32.xlu0 %v367
        %v369 = vpop.xlane.xlu0 %368
        %v370 = vmul.f32 %v360, %v345
        %v371 = vmul.f32 %v363, %v345
        %v372 = vmul.f32 %v366, %v345
        %v373 = vmul.f32 %v369, %v345
        %v374 = vadd.f32 %v370, 1e-05
        %v375 = vadd.f32 %v371, 1e-05
        %v376 = vadd.f32 %v372, 1e-05
        %v377 = vadd.f32 %v373, 1e-05
        %v378 = vrsqrt.pop %v374
        %v379 = vmul.f32 %v378, %v374
        %v380 = vmul.f32 %v379, %v378
        %v381 = vmul.f32 0.5, %v380
        %v382 = vsub.f32 1.5, %v381
        %v383 = vmul.f32 %v378, %v382
        %vm384 = vweird.f32 %v374
        %vm385 = vweird.f32 %v378
        %vm386 = vmor %vm384, %vm385
        %v387 = vsel %vm386, %v378, %v383
        %v388 = vrsqrt.pop %v375
        %v389 = vmul.f32 %v388, %v375
        %v390 = vmul.f32 %v389, %v388
        %v391 = vmul.f32 0.5, %v390
        %v392 = vsub.f32 1.5, %v391
        %v393 = vmul.f32 %v388, %v392
        %vm394 = vweird.f32 %v375
        %vm395 = vweird.f32 %v388
        %vm396 = vmor %vm394, %vm395
        %v397 = vsel %vm396, %v388, %v393
        %v398 = vrsqrt.pop %v376
        %v399 = vmul.f32 %v398, %v376
        %v400 = vmul.f32 %v399, %v398
        %v401 = vmul.f32 0.5, %v400
        %v402 = vsub.f32 1.5, %v401
        %v403 = vmul.f32 %v398, %v402
        %vm404 = vweird.f32 %v376
        %vm405 = vweird.f32 %v398
        %vm406 = vmor %vm404, %vm405
        %v407 = vsel %vm406, %v398, %v403
        %v408 = vrsqrt.pop %v377
        %v409 = vmul.f32 %v408, %v377
        %v410 = vmul.f32 %v409, %v408
        %v411 = vmul.f32 0.5, %v410
        %v412 = vsub.f32 1.5, %v411
        %v413 = vmul.f32 %v408, %v412
        %vm414 = vweird.f32 %v377
        %vm415 = vweird.f32 %v408
        %vm416 = vmor %vm414, %vm415
        %v417 = vsel %vm416, %v408, %v413
        %v418 = vmul.f32 %v350, %v387
        %v419 = vmul.f32 %v351, %v397
        %v420 = vmul.f32 %v352, %v407
        %v421 = vmul.f32 %v353, %v417
        %v422 = vld [vmem:[#allocation5] sm:$0x1]
        %v424 = vperm.slane %v422, 0
        %v426 = vmul.f32 %v418, %v424
        %v427 = vmul.f32 %v419, %v424
        %v428 = vmul.f32 %v420, %v424
        %v429 = vmul.f32 %v421, %v424
        %v430 = vld [vmem:[%s2] sm:$0x1]
        %v432 = vperm.slane %v430, 0
        %v434 = vadd.f32 %v426, %v432
        %v435 = vadd.f32 %v427, %v432
        %v436 = vadd.f32 %v428, %v432
        %v437 = vadd.f32 %v429, %v432
        %v438 = vld [vmem:[#allocation7] sm:$0xff]
        %v439 = vld [vmem:[#allocation7 + $0x8] sm:$0xff]
        %v440 = vld [vmem:[#allocation7 + $0x10] sm:$0xff]
        %v441 = vld [vmem:[#allocation7 + $0x18] sm:$0xff]
        %v443 = vsel %vm326, %v434, 0
        %v446 = vsel %vm326, %v435, 0
        %v449 = vsel %vm326, %v436, 0
        %v452 = vsel %vm326, %v437, 0
        %454 = vmatpush.msra.mxu0 0.0
        %455 = vmatpush.msra.mxu0 0.0
        %456 = vmatpush.msra.mxu0 0.0
        %457 = vmatpush.msra.mxu0 0.0
        %458 = vmatpush.msra.mxu0 0.0
        %459 = vmatpush.msra.mxu0 0.0
        %460 = vmatpush.msra.mxu0 0.0
        %461 = vmatpush.msra.mxu0 0.0
        %462 = vmatpush.msra.mxu0 0.0
        %463 = vmatpush.msra.mxu0 0.0
        %464 = vmatpush.msra.mxu0 0.0
        %465 = vmatpush.msra.mxu0 0.0
        %466 = vmatpush.msra.mxu0 %v441
        %467 = vmatpush.msra.mxu0 %v440
        %468 = vmatpush.msra.mxu0 %v439
        %469 = vmatpush.msra.mxu0 %v438
        %470 = vmatmul.f32.gmra.mxu0 %v443
        %v471 = vpop.f32.mrf.mxu0
        %v472 = vadd.f32 0.0, %v471
        %473 = vmatmul.f32.gmra.mxu0 %v446
        %v474 = vpop.f32.mrf.mxu0
        %v475 = vadd.f32 0.0, %v474
        %476 = vmatmul.f32.gmra.mxu0 %v449
        %v477 = vpop.f32.mrf.mxu0
        %v478 = vadd.f32 0.0, %v477
        %479 = vmatmul.f32.gmra.mxu0 %v452
        %v480 = vpop.f32.mrf.mxu0
        %v481 = vadd.f32 0.0, %v480
        %482 = vdwg.mxu0
        %484 = vrot.lane.b32.xlu0 %v472, 96
        %v485 = vpop.permute.xlu0 %484
        %vm486 = vcmask 130048
        %v487 = vsel %vm486, %v472, 0
        %v489 = vsel %vm486, %v485, 0
        %491 = vmatpush.xpose.msra.mxu0 0.0
        %492 = vmatpush.xpose.msra.mxu0 0.0
        %493 = vmatpush.xpose.msra.mxu0 0.0
        %494 = vmatpush.xpose.msra.mxu0 0.0
        %495 = vmatpush.xpose.msra.mxu0 0.0
        %496 = vmatpush.xpose.msra.mxu0 0.0
        %497 = vmatpush.xpose.msra.mxu0 0.0
        %498 = vmatpush.xpose.msra.mxu0 0.0
        %499 = vmatpush.xpose.msra.mxu0 0.0
        %500 = vmatpush.xpose.msra.mxu0 0.0
        %501 = vmatpush.xpose.msra.mxu0 0.0
        %502 = vmatpush.xpose.msra.mxu0 0.0
        %503 = vmatpush.xpose.msra.mxu0 0.0
        %504 = vmatpush.xpose.msra.mxu0 0.0
        %505 = vmatpush.xpose.msra.mxu0 0.0
        %506 = vmatpush.xpose.msra.mxu0 %v489
        %507 = vmatmul.f32.gmra.mxu0 %v487
        %v508 = vpop.f32.mrf.mxu0
        %v509 = vadd.f32 0.0, %v508
        %510 = vdwg.mxu0
        %512 = vrot.lane.b32.xlu0 %v475, 96
        %v513 = vpop.permute.xlu0 %512
        %v514 = vsel %vm486, %v475, 0
        %v516 = vsel %vm486, %v513, 0
        %518 = vmatpush.xpose.msra.mxu0 0.0
        %519 = vmatpush.xpose.msra.mxu0 0.0
        %520 = vmatpush.xpose.msra.mxu0 0.0
        %521 = vmatpush.xpose.msra.mxu0 0.0
        %522 = vmatpush.xpose.msra.mxu0 0.0
        %523 = vmatpush.xpose.msra.mxu0 0.0
        %524 = vmatpush.xpose.msra.mxu0 0.0
        %525 = vmatpush.xpose.msra.mxu0 0.0
        %526 = vmatpush.xpose.msra.mxu0 0.0
        %527 = vmatpush.xpose.msra.mxu0 0.0
        %528 = vmatpush.xpose.msra.mxu0 0.0
        %529 = vmatpush.xpose.msra.mxu0 0.0
        %530 = vmatpush.xpose.msra.mxu0 0.0
        %531 = vmatpush.xpose.msra.mxu0 0.0
        %532 = vmatpush.xpose.msra.mxu0 0.0
        %533 = vmatpush.xpose.msra.mxu0 %v516
        %534 = vmatmul.f32.gmra.mxu0 %v514
        %v535 = vpop.f32.mrf.mxu0
        %v536 = vadd.f32 0.0, %v535
        %537 = vdwg.mxu0
        %539 = vrot.lane.b32.xlu0 %v478, 96
        %v540 = vpop.permute.xlu0 %539
        %v541 = vsel %vm486, %v478, 0
        %v543 = vsel %vm486, %v540, 0
        %545 = vmatpush.xpose.msra.mxu0 0.0
        %546 = vmatpush.xpose.msra.mxu0 0.0
        %547 = vmatpush.xpose.msra.mxu0 0.0
        %548 = vmatpush.xpose.msra.mxu0 0.0
        %549 = vmatpush.xpose.msra.mxu0 0.0
        %550 = vmatpush.xpose.msra.mxu0 0.0
        %551 = vmatpush.xpose.msra.mxu0 0.0
        %552 = vmatpush.xpose.msra.mxu0 0.0
        %553 = vmatpush.xpose.msra.mxu0 0.0
        %554 = vmatpush.xpose.msra.mxu0 0.0
        %555 = vmatpush.xpose.msra.mxu0 0.0
        %556 = vmatpush.xpose.msra.mxu0 0.0
        %557 = vmatpush.xpose.msra.mxu0 0.0
        %558 = vmatpush.xpose.msra.mxu0 0.0
        %559 = vmatpush.xpose.msra.mxu0 0.0
        %560 = vmatpush.xpose.msra.mxu0 %v543
        %561 = vmatmul.f32.gmra.mxu0 %v541
        %v562 = vpop.f32.mrf.mxu0
        %v563 = vadd.f32 0.0, %v562
        %564 = vdwg.mxu0
        %566 = vrot.lane.b32.xlu0 %v481, 96
        %v567 = vpop.permute.xlu0 %566
        %v568 = vsel %vm486, %v481, 0
        %v570 = vsel %vm486, %v567, 0
        %572 = vmatpush.xpose.msra.mxu0 0.0
        %573 = vmatpush.xpose.msra.mxu0 0.0
        %574 = vmatpush.xpose.msra.mxu0 0.0
        %575 = vmatpush.xpose.msra.mxu0 0.0
        %576 = vmatpush.xpose.msra.mxu0 0.0
        %577 = vmatpush.xpose.msra.mxu0 0.0
        %578 = vmatpush.xpose.msra.mxu0 0.0
        %579 = vmatpush.xpose.msra.mxu0 0.0
        %580 = vmatpush.xpose.msra.mxu0 0.0
        %581 = vmatpush.xpose.msra.mxu0 0.0
        %582 = vmatpush.xpose.msra.mxu0 0.0
        %583 = vmatpush.xpose.msra.mxu0 0.0
        %584 = vmatpush.xpose.msra.mxu0 0.0
        %585 = vmatpush.xpose.msra.mxu0 0.0
        %586 = vmatpush.xpose.msra.mxu0 0.0
        %587 = vmatpush.xpose.msra.mxu0 %v570
        %588 = vmatmul.f32.gmra.mxu0 %v568
        %v589 = vpop.f32.mrf.mxu0
        %v590 = vadd.f32 0.0, %v589
        %591 = vdwg.mxu0
        %v592 = vmul.f32 %v509, 0.25
        %v593 = vmul.f32 %v536, 0.25
        %v594 = vmul.f32 %v563, 0.25
        %v595 = vmul.f32 %v590, 0.25
        %vm596 = vcmask 64512
        %v597 = vsel %vm596, %v592, -inf
        %598 = vmax.xlane.f32.xlu0 %v597
        %v599 = vpop.xlane.xlu0 %598
        %v600 = vsel %vm596, %v593, -inf
        %601 = vmax.xlane.f32.xlu0 %v600
        %v602 = vpop.xlane.xlu0 %601
        %v603 = vsel %vm596, %v594, -inf
        %604 = vmax.xlane.f32.xlu0 %v603
        %v605 = vpop.xlane.xlu0 %604
        %v606 = vsel %vm596, %v595, -inf
        %607 = vmax.xlane.f32.xlu0 %v606
        %v608 = vpop.xlane.xlu0 %607
        %v609 = vsub.f32 %v592, %v599
        %v610 = vsub.f32 %v593, %v602
        %v611 = vsub.f32 %v594, %v605
        %v612 = vsub.f32 %v595, %v608
        %v613 = vmul.f32 %v609, 1.442695
        %v614 = vpow.pop %v613
        %v615 = vmul.f32 %v610, 1.442695
        %v616 = vpow.pop %v615
        %v617 = vmul.f32 %v611, 1.442695
        %v618 = vpow.pop %v617
        %v619 = vmul.f32 %v612, 1.442695
        %v620 = vpow.pop %v619
        %v621 = vsel %vm596, %v614, 0.0
        %622 = vadd.xlane.f32.xlu0 %v621
        %v623 = vpop.xlane.xlu0 %622
        %v624 = vsel %vm596, %v616, 0.0
        %625 = vadd.xlane.f32.xlu0 %v624
        %v626 = vpop.xlane.xlu0 %625
        %v627 = vsel %vm596, %v618, 0.0
        %628 = vadd.xlane.f32.xlu0 %v627
        %v629 = vpop.xlane.xlu0 %628
        %v630 = vsel %vm596, %v620, 0.0
        %631 = vadd.xlane.f32.xlu0 %v630
        %v632 = vpop.xlane.xlu0 %631
        %v633 = vrcp.pop %v623
        %v634 = vmul.f32 %v623, %v633
        %v635 = vsub.f32 1.0, %v634
        %v636 = vmul.f32 %v633, %v635
        %v637 = vadd.f32 %v633, %v636
        %vm638 = vweird.f32 %v623
        %vm639 = vweird.f32 %v633
        %vm640 = vmor %vm638, %vm639
        %v641 = vsel %vm640, %v633, %v637
        %v642 = vand.u32 2147483647, %v623
        %vm643 = vcmp.eq.f32.partialorder %v642, 8.507059e+37
        %v644 = vand.u32 %v623, 2147483648
        %v645 = vor.u32 1.1754944e-38, %v644
        %v646 = vsel %vm643, %v645, %v641
        %v647 = vmul.f32 %v614, %v646
        %v648 = vrcp.pop %v626
        %v649 = vmul.f32 %v626, %v648
        %v650 = vsub.f32 1.0, %v649
        %v651 = vmul.f32 %v648, %v650
        %v652 = vadd.f32 %v648, %v651
        %vm653 = vweird.f32 %v626
        %vm654 = vweird.f32 %v648
        %vm655 = vmor %vm653, %vm654
        %v656 = vsel %vm655, %v648, %v652
        %v657 = vand.u32 2147483647, %v626
        %vm658 = vcmp.eq.f32.partialorder %v657, 8.507059e+37
        %v659 = vand.u32 %v626, 2147483648
        %v660 = vor.u32 1.1754944e-38, %v659
        %v661 = vsel %vm658, %v660, %v656
        %v662 = vmul.f32 %v616, %v661
        %v663 = vrcp.pop %v629
        %v664 = vmul.f32 %v629, %v663
        %v665 = vsub.f32 1.0, %v664
        %v666 = vmul.f32 %v663, %v665
        %v667 = vadd.f32 %v663, %v666
        %vm668 = vweird.f32 %v629
        %vm669 = vweird.f32 %v663
        %vm670 = vmor %vm668, %vm669
        %v671 = vsel %vm670, %v663, %v667
        %v672 = vand.u32 2147483647, %v629
        %vm673 = vcmp.eq.f32.partialorder %v672, 8.507059e+37
        %v674 = vand.u32 %v629, 2147483648
        %v675 = vor.u32 1.1754944e-38, %v674
        %v676 = vsel %vm673, %v675, %v671
        %v677 = vmul.f32 %v618, %v676
        %v678 = vrcp.pop %v632
        %v679 = vmul.f32 %v632, %v678
        %v680 = vsub.f32 1.0, %v679
        %v681 = vmul.f32 %v678, %v680
        %v682 = vadd.f32 %v678, %v681
        %vm683 = vweird.f32 %v632
        %vm684 = vweird.f32 %v678
        %vm685 = vmor %vm683, %vm684
        %v686 = vsel %vm685, %v678, %v682
        %v687 = vand.u32 2147483647, %v632
        %vm688 = vcmp.eq.f32.partialorder %v687, 8.507059e+37
        %v689 = vand.u32 %v632, 2147483648
        %v690 = vor.u32 1.1754944e-38, %v689
        %v691 = vsel %vm688, %v690, %v686
        %v692 = vmul.f32 %v620, %v691
        %693 = vrot.lane.b32.xlu0 %v472, 64
        %v694 = vpop.permute.xlu0 %693
        %v697 = vsel %vm596, %v647, 0
        %699 = vmatpush.msra.mxu0 0.0
        %700 = vmatpush.msra.mxu0 0.0
        %701 = vmatpush.msra.mxu0 0.0
        %702 = vmatpush.msra.mxu0 0.0
        %703 = vmatpush.msra.mxu0 0.0
        %704 = vmatpush.msra.mxu0 0.0
        %705 = vmatpush.msra.mxu0 0.0
        %706 = vmatpush.msra.mxu0 0.0
        %707 = vmatpush.msra.mxu0 0.0
        %708 = vmatpush.msra.mxu0 0.0
        %709 = vmatpush.msra.mxu0 0.0
        %710 = vmatpush.msra.mxu0 0.0
        %711 = vmatpush.msra.mxu0 0.0
        %712 = vmatpush.msra.mxu0 0.0
        %713 = vmatpush.msra.mxu0 0.0
        %714 = vmatpush.msra.mxu0 %v694
        %715 = vmatmul.f32.gmra.mxu0 %v697
        %v716 = vpop.f32.mrf.mxu0
        %v717 = vadd.f32 0.0, %v716
        %718 = vdwg.mxu0
        %719 = vrot.lane.b32.xlu0 %v475, 64
        %v720 = vpop.permute.xlu0 %719
        %v723 = vsel %vm596, %v662, 0
        %725 = vmatpush.msra.mxu0 0.0
        %726 = vmatpush.msra.mxu0 0.0
        %727 = vmatpush.msra.mxu0 0.0
        %728 = vmatpush.msra.mxu0 0.0
        %729 = vmatpush.msra.mxu0 0.0
        %730 = vmatpush.msra.mxu0 0.0
        %731 = vmatpush.msra.mxu0 0.0
        %732 = vmatpush.msra.mxu0 0.0
        %733 = vmatpush.msra.mxu0 0.0
        %734 = vmatpush.msra.mxu0 0.0
        %735 = vmatpush.msra.mxu0 0.0
        %736 = vmatpush.msra.mxu0 0.0
        %737 = vmatpush.msra.mxu0 0.0
        %738 = vmatpush.msra.mxu0 0.0
        %739 = vmatpush.msra.mxu0 0.0
        %740 = vmatpush.msra.mxu0 %v720
        %741 = vmatmul.f32.gmra.mxu0 %v723
        %v742 = vpop.f32.mrf.mxu0
        %v743 = vadd.f32 0.0, %v742
        %744 = vdwg.mxu0
        %745 = vrot.lane.b32.xlu0 %v478, 64
        %v746 = vpop.permute.xlu0 %745
        %v749 = vsel %vm596, %v677, 0
        %751 = vmatpush.msra.mxu0 0.0
        %752 = vmatpush.msra.mxu0 0.0
        %753 = vmatpush.msra.mxu0 0.0
        %754 = vmatpush.msra.mxu0 0.0
        %755 = vmatpush.msra.mxu0 0.0
        %756 = vmatpush.msra.mxu0 0.0
        %757 = vmatpush.msra.mxu0 0.0
        %758 = vmatpush.msra.mxu0 0.0
        %759 = vmatpush.msra.mxu0 0.0
        %760 = vmatpush.msra.mxu0 0.0
        %761 = vmatpush.msra.mxu0 0.0
        %762 = vmatpush.msra.mxu0 0.0
        %763 = vmatpush.msra.mxu0 0.0
        %764 = vmatpush.msra.mxu0 0.0
        %765 = vmatpush.msra.mxu0 0.0
        %766 = vmatpush.msra.mxu0 %v746
        %767 = vmatmul.f32.gmra.mxu0 %v749
        %v768 = vpop.f32.mrf.mxu0
        %v769 = vadd.f32 0.0, %v768
        %770 = vdwg.mxu0
        %771 = vrot.lane.b32.xlu0 %v481, 64
        %v772 = vpop.permute.xlu0 %771
        %v775 = vsel %vm596, %v692, 0
        %777 = vmatpush.msra.mxu0 0.0
        %778 = vmatpush.msra.mxu0 0.0
        %779 = vmatpush.msra.mxu0 0.0
        %780 = vmatpush.msra.mxu0 0.0
        %781 = vmatpush.msra.mxu0 0.0
        %782 = vmatpush.msra.mxu0 0.0
        %783 = vmatpush.msra.mxu0 0.0
        %784 = vmatpush.msra.mxu0 0.0
        %785 = vmatpush.msra.mxu0 0.0
        %786 = vmatpush.msra.mxu0 0.0
        %787 = vmatpush.msra.mxu0 0.0
        %788 = vmatpush.msra.mxu0 0.0
        %789 = vmatpush.msra.mxu0 0.0
        %790 = vmatpush.msra.mxu0 0.0
        %791 = vmatpush.msra.mxu0 0.0
        %792 = vmatpush.msra.mxu0 %v772
        %793 = vmatmul.f32.gmra.mxu0 %v775
        %v794 = vpop.f32.mrf.mxu0
        %v795 = vadd.f32 0.0, %v794
        %796 = vdwg.mxu0
        %797 = vrot.lane.b32.xlu0 %v472, 112
        %v798 = vpop.permute.xlu0 %797
        %799 = vrot.lane.b32.xlu0 %v472, 80
        %v800 = vpop.permute.xlu0 %799
        %v801 = vsel %vm486, %v798, 0
        %v803 = vsel %vm486, %v800, 0
        %805 = vmatpush.xpose.msra.mxu0 0.0
        %806 = vmatpush.xpose.msra.mxu0 0.0
        %807 = vmatpush.xpose.msra.mxu0 0.0
        %808 = vmatpush.xpose.msra.mxu0 0.0
        %809 = vmatpush.xpose.msra.mxu0 0.0
        %810 = vmatpush.xpose.msra.mxu0 0.0
        %811 = vmatpush.xpose.msra.mxu0 0.0
        %812 = vmatpush.xpose.msra.mxu0 0.0
        %813 = vmatpush.xpose.msra.mxu0 0.0
        %814 = vmatpush.xpose.msra.mxu0 0.0
        %815 = vmatpush.xpose.msra.mxu0 0.0
        %816 = vmatpush.xpose.msra.mxu0 0.0
        %817 = vmatpush.xpose.msra.mxu0 0.0
        %818 = vmatpush.xpose.msra.mxu0 0.0
        %819 = vmatpush.xpose.msra.mxu0 0.0
        %820 = vmatpush.xpose.msra.mxu0 %v803
        %821 = vmatmul.f32.gmra.mxu0 %v801
        %v822 = vpop.f32.mrf.mxu0
        %v823 = vadd.f32 0.0, %v822
        %824 = vdwg.mxu0
        %825 = vrot.lane.b32.xlu0 %v475, 112
        %v826 = vpop.permute.xlu0 %825
        %827 = vrot.lane.b32.xlu0 %v475, 80
        %v828 = vpop.permute.xlu0 %827
        %v829 = vsel %vm486, %v826, 0
        %v831 = vsel %vm486, %v828, 0
        %833 = vmatpush.xpose.msra.mxu0 0.0
        %834 = vmatpush.xpose.msra.mxu0 0.0
        %835 = vmatpush.xpose.msra.mxu0 0.0
        %836 = vmatpush.xpose.msra.mxu0 0.0
        %837 = vmatpush.xpose.msra.mxu0 0.0
        %838 = vmatpush.xpose.msra.mxu0 0.0
        %839 = vmatpush.xpose.msra.mxu0 0.0
        %840 = vmatpush.xpose.msra.mxu0 0.0
        %841 = vmatpush.xpose.msra.mxu0 0.0
        %842 = vmatpush.xpose.msra.mxu0 0.0
        %843 = vmatpush.xpose.msra.mxu0 0.0
        %844 = vmatpush.xpose.msra.mxu0 0.0
        %845 = vmatpush.xpose.msra.mxu0 0.0
        %846 = vmatpush.xpose.msra.mxu0 0.0
        %847 = vmatpush.xpose.msra.mxu0 0.0
        %848 = vmatpush.xpose.msra.mxu0 %v831
        %849 = vmatmul.f32.gmra.mxu0 %v829
        %v850 = vpop.f32.mrf.mxu0
        %v851 = vadd.f32 0.0, %v850
        %852 = vdwg.mxu0
        %853 = vrot.lane.b32.xlu0 %v478, 112
        %v854 = vpop.permute.xlu0 %853
        %855 = vrot.lane.b32.xlu0 %v478, 80
        %v856 = vpop.permute.xlu0 %855
        %v857 = vsel %vm486, %v854, 0
        %v859 = vsel %vm486, %v856, 0
        %861 = vmatpush.xpose.msra.mxu0 0.0
        %862 = vmatpush.xpose.msra.mxu0 0.0
        %863 = vmatpush.xpose.msra.mxu0 0.0
        %864 = vmatpush.xpose.msra.mxu0 0.0
        %865 = vmatpush.xpose.msra.mxu0 0.0
        %866 = vmatpush.xpose.msra.mxu0 0.0
        %867 = vmatpush.xpose.msra.mxu0 0.0
        %868 = vmatpush.xpose.msra.mxu0 0.0
        %869 = vmatpush.xpose.msra.mxu0 0.0
        %870 = vmatpush.xpose.msra.mxu0 0.0
        %871 = vmatpush.xpose.msra.mxu0 0.0
        %872 = vmatpush.xpose.msra.mxu0 0.0
        %873 = vmatpush.xpose.msra.mxu0 0.0
        %874 = vmatpush.xpose.msra.mxu0 0.0
        %875 = vmatpush.xpose.msra.mxu0 0.0
        %876 = vmatpush.xpose.msra.mxu0 %v859
        %877 = vmatmul.f32.gmra.mxu0 %v857
        %v878 = vpop.f32.mrf.mxu0
        %v879 = vadd.f32 0.0, %v878
        %880 = vdwg.mxu0
        %881 = vrot.lane.b32.xlu0 %v481, 112
        %v882 = vpop.permute.xlu0 %881
        %883 = vrot.lane.b32.xlu0 %v481, 80
        %v884 = vpop.permute.xlu0 %883
        %v885 = vsel %vm486, %v882, 0
        %v887 = vsel %vm486, %v884, 0
        %889 = vmatpush.xpose.msra.mxu0 0.0
        %890 = vmatpush.xpose.msra.mxu0 0.0
        %891 = vmatpush.xpose.msra.mxu0 0.0
        %892 = vmatpush.xpose.msra.mxu0 0.0
        %893 = vmatpush.xpose.msra.mxu0 0.0
        %894 = vmatpush.xpose.msra.mxu0 0.0
        %895 = vmatpush.xpose.msra.mxu0 0.0
        %896 = vmatpush.xpose.msra.mxu0 0.0
        %897 = vmatpush.xpose.msra.mxu0 0.0
        %898 = vmatpush.xpose.msra.mxu0 0.0
        %899 = vmatpush.xpose.msra.mxu0 0.0
        %900 = vmatpush.xpose.msra.mxu0 0.0
        %901 = vmatpush.xpose.msra.mxu0 0.0
        %902 = vmatpush.xpose.msra.mxu0 0.0
        %903 = vmatpush.xpose.msra.mxu0 0.0
        %904 = vmatpush.xpose.msra.mxu0 %v887
        %905 = vmatmul.f32.gmra.mxu0 %v885
        %v906 = vpop.f32.mrf.mxu0
        %v907 = vadd.f32 0.0, %v906
        %908 = vdwg.mxu0
        %v909 = vmul.f32 %v823, 0.25
        %v910 = vmul.f32 %v851, 0.25
        %v911 = vmul.f32 %v879, 0.25
        %v912 = vmul.f32 %v907, 0.25
        %v913 = vsel %vm596, %v909, -inf
        %914 = vmax.xlane.f32.xlu0 %v913
        %v915 = vpop.xlane.xlu0 %914
        %v916 = vsel %vm596, %v910, -inf
        %917 = vmax.xlane.f32.xlu0 %v916
        %v918 = vpop.xlane.xlu0 %917
        %v919 = vsel %vm596, %v911, -inf
        %920 = vmax.xlane.f32.xlu0 %v919
        %v921 = vpop.xlane.xlu0 %920
        %v922 = vsel %vm596, %v912, -inf
        %923 = vmax.xlane.f32.xlu0 %v922
        %v924 = vpop.xlane.xlu0 %923
        %v925 = vsub.f32 %v909, %v915
        %v926 = vsub.f32 %v910, %v918
        %v927 = vsub.f32 %v911, %v921
        %v928 = vsub.f32 %v912, %v924
        %v929 = vmul.f32 %v925, 1.442695
        %v930 = vpow.pop %v929
        %v931 = vmul.f32 %v926, 1.442695
        %v932 = vpow.pop %v931
        %v933 = vmul.f32 %v927, 1.442695
        %v934 = vpow.pop %v933
        %v935 = vmul.f32 %v928, 1.442695
        %v936 = vpow.pop %v935
        %v937 = vsel %vm596, %v930, 0.0
        %938 = vadd.xlane.f32.xlu0 %v937
        %v939 = vpop.xlane.xlu0 %938
        %v940 = vsel %vm596, %v932, 0.0
        %941 = vadd.xlane.f32.xlu0 %v940
        %v942 = vpop.xlane.xlu0 %941
        %v943 = vsel %vm596, %v934, 0.0
        %944 = vadd.xlane.f32.xlu0 %v943
        %v945 = vpop.xlane.xlu0 %944
        %v946 = vsel %vm596, %v936, 0.0
        %947 = vadd.xlane.f32.xlu0 %v946
        %v948 = vpop.xlane.xlu0 %947
        %v949 = vrcp.pop %v939
        %v950 = vmul.f32 %v939, %v949
        %v951 = vsub.f32 1.0, %v950
        %v952 = vmul.f32 %v949, %v951
        %v953 = vadd.f32 %v949, %v952
        %vm954 = vweird.f32 %v939
        %vm955 = vweird.f32 %v949
        %vm956 = vmor %vm954, %vm955
        %v957 = vsel %vm956, %v949, %v953
        %v958 = vand.u32 2147483647, %v939
        %vm959 = vcmp.eq.f32.partialorder %v958, 8.507059e+37
        %v960 = vand.u32 %v939, 2147483648
        %v961 = vor.u32 1.1754944e-38, %v960
        %v962 = vsel %vm959, %v961, %v957
        %v963 = vmul.f32 %v930, %v962
        %v964 = vrcp.pop %v942
        %v965 = vmul.f32 %v942, %v964
        %v966 = vsub.f32 1.0, %v965
        %v967 = vmul.f32 %v964, %v966
        %v968 = vadd.f32 %v964, %v967
        %vm969 = vweird.f32 %v942
        %vm970 = vweird.f32 %v964
        %vm971 = vmor %vm969, %vm970
        %v972 = vsel %vm971, %v964, %v968
        %v973 = vand.u32 2147483647, %v942
        %vm974 = vcmp.eq.f32.partialorder %v973, 8.507059e+37
        %v975 = vand.u32 %v942, 2147483648
        %v976 = vor.u32 1.1754944e-38, %v975
        %v977 = vsel %vm974, %v976, %v972
        %v978 = vmul.f32 %v932, %v977
        %v979 = vrcp.pop %v945
        %v980 = vmul.f32 %v945, %v979
        %v981 = vsub.f32 1.0, %v980
        %v982 = vmul.f32 %v979, %v981
        %v983 = vadd.f32 %v979, %v982
        %vm984 = vweird.f32 %v945
        %vm985 = vweird.f32 %v979
        %vm986 = vmor %vm984, %vm985
        %v987 = vsel %vm986, %v979, %v983
        %v988 = vand.u32 2147483647, %v945
        %vm989 = vcmp.eq.f32.partialorder %v988, 8.507059e+37
        %v990 = vand.u32 %v945, 2147483648
        %v991 = vor.u32 1.1754944e-38, %v990
        %v992 = vsel %vm989, %v991, %v987
        %v993 = vmul.f32 %v934, %v992
        %v994 = vrcp.pop %v948
        %v995 = vmul.f32 %v948, %v994
        %v996 = vsub.f32 1.0, %v995
        %v997 = vmul.f32 %v994, %v996
        %v998 = vadd.f32 %v994, %v997
        %vm999 = vweird.f32 %v948
        %vm1000 = vweird.f32 %v994
        %vm1001 = vmor %vm999, %vm1000
        %v1002 = vsel %vm1001, %v994, %v998
        %v1003 = vand.u32 2147483647, %v948
        %vm1004 = vcmp.eq.f32.partialorder %v1003, 8.507059e+37
        %v1005 = vand.u32 %v948, 2147483648
        %v1006 = vor.u32 1.1754944e-38, %v1005
        %v1007 = vsel %vm1004, %v1006, %v1002
        %v1008 = vmul.f32 %v936, %v1007
        %1009 = vrot.lane.b32.xlu0 %v472, 48
        %v1010 = vpop.permute.xlu0 %1009
        %v1013 = vsel %vm596, %v963, 0
        %1015 = vmatpush.msra.mxu0 0.0
        %1016 = vmatpush.msra.mxu0 0.0
        %1017 = vmatpush.msra.mxu0 0.0
        %1018 = vmatpush.msra.mxu0 0.0
        %1019 = vmatpush.msra.mxu0 0.0
        %1020 = vmatpush.msra.mxu0 0.0
        %1021 = vmatpush.msra.mxu0 0.0
        %1022 = vmatpush.msra.mxu0 0.0
        %1023 = vmatpush.msra.mxu0 0.0
        %1024 = vmatpush.msra.mxu0 0.0
        %1025 = vmatpush.msra.mxu0 0.0
        %1026 = vmatpush.msra.mxu0 0.0
        %1027 = vmatpush.msra.mxu0 0.0
        %1028 = vmatpush.msra.mxu0 0.0
        %1029 = vmatpush.msra.mxu0 0.0
        %1030 = vmatpush.msra.mxu0 %v1010
        %1031 = vmatmul.f32.gmra.mxu0 %v1013
        %v1032 = vpop.f32.mrf.mxu0
        %v1033 = vadd.f32 0.0, %v1032
        %1034 = vdwg.mxu0
        %1035 = vrot.lane.b32.xlu0 %v475, 48
        %v1036 = vpop.permute.xlu0 %1035
        %v1039 = vsel %vm596, %v978, 0
        %1041 = vmatpush.msra.mxu0 0.0
        %1042 = vmatpush.msra.mxu0 0.0
        %1043 = vmatpush.msra.mxu0 0.0
        %1044 = vmatpush.msra.mxu0 0.0
        %1045 = vmatpush.msra.mxu0 0.0
        %1046 = vmatpush.msra.mxu0 0.0
        %1047 = vmatpush.msra.mxu0 0.0
        %1048 = vmatpush.msra.mxu0 0.0
        %1049 = vmatpush.msra.mxu0 0.0
        %1050 = vmatpush.msra.mxu0 0.0
        %1051 = vmatpush.msra.mxu0 0.0
        %1052 = vmatpush.msra.mxu0 0.0
        %1053 = vmatpush.msra.mxu0 0.0
        %1054 = vmatpush.msra.mxu0 0.0
        %1055 = vmatpush.msra.mxu0 0.0
        %1056 = vmatpush.msra.mxu0 %v1036
        %1057 = vmatmul.f32.gmra.mxu0 %v1039
        %v1058 = vpop.f32.mrf.mxu0
        %v1059 = vadd.f32 0.0, %v1058
        %1060 = vdwg.mxu0
        %1061 = vrot.lane.b32.xlu0 %v478, 48
        %v1062 = vpop.permute.xlu0 %1061
        %v1065 = vsel %vm596, %v993, 0
        %1067 = vmatpush.msra.mxu0 0.0
        %1068 = vmatpush.msra.mxu0 0.0
        %1069 = vmatpush.msra.mxu0 0.0
        %1070 = vmatpush.msra.mxu0 0.0
        %1071 = vmatpush.msra.mxu0 0.0
        %1072 = vmatpush.msra.mxu0 0.0
        %1073 = vmatpush.msra.mxu0 0.0
        %1074 = vmatpush.msra.mxu0 0.0
        %1075 = vmatpush.msra.mxu0 0.0
        %1076 = vmatpush.msra.mxu0 0.0
        %1077 = vmatpush.msra.mxu0 0.0
        %1078 = vmatpush.msra.mxu0 0.0
        %1079 = vmatpush.msra.mxu0 0.0
        %1080 = vmatpush.msra.mxu0 0.0
        %1081 = vmatpush.msra.mxu0 0.0
        %1082 = vmatpush.msra.mxu0 %v1062
        %1083 = vmatmul.f32.gmra.mxu0 %v1065
        %v1084 = vpop.f32.mrf.mxu0
        %v1085 = vadd.f32 0.0, %v1084
        %1086 = vdwg.mxu0
        %1087 = vrot.lane.b32.xlu0 %v481, 48
        %v1088 = vpop.permute.xlu0 %1087
        %v1091 = vsel %vm596, %v1008, 0
        %1093 = vmatpush.msra.mxu0 0.0
        %1094 = vmatpush.msra.mxu0 0.0
        %1095 = vmatpush.msra.mxu0 0.0
        %1096 = vmatpush.msra.mxu0 0.0
        %1097 = vmatpush.msra.mxu0 0.0
        %1098 = vmatpush.msra.mxu0 0.0
        %1099 = vmatpush.msra.mxu0 0.0
        %1100 = vmatpush.msra.mxu0 0.0
        %1101 = vmatpush.msra.mxu0 0.0
        %1102 = vmatpush.msra.mxu0 0.0
        %1103 = vmatpush.msra.mxu0 0.0
        %1104 = vmatpush.msra.mxu0 0.0
        %1105 = vmatpush.msra.mxu0 0.0
        %1106 = vmatpush.msra.mxu0 0.0
        %1107 = vmatpush.msra.mxu0 0.0
        %1108 = vmatpush.msra.mxu0 %v1088
        %1109 = vmatmul.f32.gmra.mxu0 %v1091
        %v1110 = vpop.f32.mrf.mxu0
        %v1111 = vadd.f32 0.0, %v1110
        %1112 = vdwg.mxu0
        %1117 = vrot.lane.b32.xlu0 %v1033, 16
        %v1118 = vpop.permute.xlu0 %1117
        %1119 = vrot.lane.b32.xlu0 %v1059, 16
        %v1120 = vpop.permute.xlu0 %1119
        %1121 = vrot.lane.b32.xlu0 %v1085, 16
        %v1122 = vpop.permute.xlu0 %1121
        %1123 = vrot.lane.b32.xlu0 %v1111, 16
        %v1124 = vpop.permute.xlu0 %1123
        %v1129 = vsel %vm486, %v717, %v1118
        %v1130 = vsel %vm486, %v743, %v1120
        %v1131 = vsel %vm486, %v769, %v1122
        %v1132 = vsel %vm486, %v795, %v1124
        %v1133 = vld [vmem:[#allocation8] sm:$0xff]
        %v1134 = vld [vmem:[#allocation8 + $0x8] sm:$0xff]
        %v1135 = vld [vmem:[#allocation8 + $0x10] sm:$0xff]
        %v1136 = vld [vmem:[#allocation8 + $0x18] sm:$0xff]
        %v1138 = vsel %vm326, %v1129, 0
        %v1141 = vsel %vm326, %v1130, 0
        %v1144 = vsel %vm326, %v1131, 0
        %v1147 = vsel %vm326, %v1132, 0
        %1149 = vmatpush.msra.mxu0 0.0
        %1150 = vmatpush.msra.mxu0 0.0
        %1151 = vmatpush.msra.mxu0 0.0
        %1152 = vmatpush.msra.mxu0 0.0
        %1153 = vmatpush.msra.mxu0 0.0
        %1154 = vmatpush.msra.mxu0 0.0
        %1155 = vmatpush.msra.mxu0 0.0
        %1156 = vmatpush.msra.mxu0 0.0
        %1157 = vmatpush.msra.mxu0 0.0
        %1158 = vmatpush.msra.mxu0 0.0
        %1159 = vmatpush.msra.mxu0 0.0
        %1160 = vmatpush.msra.mxu0 0.0
        %1161 = vmatpush.msra.mxu0 %v1136
        %1162 = vmatpush.msra.mxu0 %v1135
        %1163 = vmatpush.msra.mxu0 %v1134
        %1164 = vmatpush.msra.mxu0 %v1133
        %1165 = vmatmul.f32.gmra.mxu0 %v1138
        %v1166 = vpop.f32.mrf.mxu0
        %v1167 = vadd.f32 0.0, %v1166
        %1168 = vmatmul.f32.gmra.mxu0 %v1141
        %v1169 = vpop.f32.mrf.mxu0
        %v1170 = vadd.f32 0.0, %v1169
        %1171 = vmatmul.f32.gmra.mxu0 %v1144
        %v1172 = vpop.f32.mrf.mxu0
        %v1173 = vadd.f32 0.0, %v1172
        %1174 = vmatmul.f32.gmra.mxu0 %v1147
        %v1175 = vpop.f32.mrf.mxu0
        %v1176 = vadd.f32 0.0, %v1175
        %1177 = vdwg.mxu0
        %v1178 = vld [vmem:[%s5] sm:$0x1]
        %v1180 = vperm.slane %v1178, 0
        %v1182 = vadd.f32 %v1167, %v1180
        %v1183 = vadd.f32 %v1170, %v1180
        %v1184 = vadd.f32 %v1173, %v1180
        %v1185 = vadd.f32 %v1176, %v1180
        %v1186 = vadd.f32 %v322, %v1182
        %v1187 = vadd.f32 %v323, %v1183
        %v1188 = vadd.f32 %v324, %v1184
        %v1189 = vadd.f32 %v325, %v1185
        %1190 = vst.msk [vmem:[%s319] sm:$0xff] %vm326, %v1186
        %1191 = vst.msk [vmem:[%s319 + $0x8] sm:$0xff] %vm326, %v1187
        %1192 = vst.msk [vmem:[%s319 + $0x10] sm:$0xff] %vm326, %v1188
        %1193 = vst.msk [vmem:[%s319 + $0x18] sm:$0xff] %vm326, %v1189
        %s1194 = sand.u32 %s164, 1
        %s1195 = scalar_lea.sflag [#allocation4], %s1194
        %s1196 = sand.u32 %s164, 1
        %s1197 = smul.addr %s1196, 32
        %s1198 = scalar_lea.vmem [#allocation10], %s1197
        // Predicated region
        $region61: #{tpu_custom_call.1} parent=43 // pred_check
          %p1199 = pneg %p174
        $region62: #{tpu_custom_call.1} parent=43 // pred_check_branch
          %1201 = sbr.rel (%p1199) target = $region64
        $region63: #{tpu_custom_call.1} parent=43 // pred_region
          %s1202 = smul.u32 4, %s25
          %1204 = vsyncadd %s1195, 0
          %s1205 = smul.addr %s1202, 8
          %s1206 = scalar_lea.hbm %s6, %s1205
          %s1207 = sshll.u32 %s1198, 4
          %s1208 = int_to_ptr.vmem [resolvable:$true] %s1207
          %s1209 = sshll.u32 %s1206, 4
          %s1210 = int_to_ptr.hbm [resolvable:$true] %s1209
          %1215 = dma.vmem_to_hbm [thread:$0]  %s1208, 512, %s1210, %s1195, 128, 128, 8
        $region64: #{tpu_custom_call.1} parent=43 // pred_fallthru
          _
      $region44: #{tpu_custom_call.1} parent=5 // pred_fallthru
        _
      %p1216 = scmp.le.s32.totalorder 2, %s20
      // Predicated region
      $region65: #{tpu_custom_call.1} parent=5 // pred_check
        %p1217 = pneg %p1216
      $region66: #{tpu_custom_call.1} parent=5 // pred_check_branch
        %1219 = sbr.rel (%p1217) target = $region68
      $region67: #{tpu_custom_call.1} parent=5 // pred_region
        %s1220 = ssub.s32 %s20, 2
        // Predicated region
        $region69: #{tpu_custom_call.1} parent=67 // pred_check
          %p1221 = pneg %p180
        $region70: #{tpu_custom_call.1} parent=67 // pred_check_branch
          %1223 = sbr.rel (%p1221) target = $region72
        $region71: #{tpu_custom_call.1} parent=67 // pred_region
          %s1224 = sand.u32 %s165, 1
          %s1225 = scalar_lea.sflag [#allocation4], %s1224
          %s1226 = sand.u32 %s165, 1
          %s1227 = smul.addr %s1226, 32
          %s1228 = scalar_lea.vmem [#allocation10], %s1227
          %1230 = dma.done %s1225, 512
        $region72: #{tpu_custom_call.1} parent=67 // pred_fallthru
          _
      $region68: #{tpu_custom_call.1} parent=5 // pred_fallthru
        _
    $region6: #{tpu_custom_call.1} parent=1 // loop_footer
      %s24 = sadd.s32 1, %s20
    $region7: #{tpu_custom_call.1} parent=1 // loop_footer_branch
      %19 = sbr.rel target = $region3
    $region8: #{tpu_custom_call.1} parent=1 // loop_exit
      _
    %1231 = vsyncpa [#allocation3], 1
    %s1232 = scalar_lea.sflag [#allocation3], 1
    %1233 = vsyncpa %s1232, 1
    %1234 = vsyncpa [#allocation6], 1
    %1235 = vsyncpa [#allocation9], 1
    %1236 = vsyncpa [#allocation4], 1
    %s1237 = scalar_lea.sflag [#allocation4], 1
    %1238 = vsyncpa %s1237, 1

</llo_original>
